<compile_context>
chip_gen: v7x
topology: tpu7x:2x2x1
jax: 0.10.0
libtpu: 0.0.40
codegen_flags: <defaults>
</compile_context>

<pallas_src>
import functools

import jax
import jax.numpy as jnp
from jax.experimental import pallas as pl
from jax.experimental.pallas import tpu as pltpu

HIDDEN_SIZE = 128   # stand-in for Hiperparameters.hidden_size
IN_FEATURES = 4
MID_FEATURES = 256
OUT_FEATURES = 4


def _round_up(n, m):
    return ((n + m - 1) // m) * m


def _mlp_kernel(x_ref, w1_ref, b1_ref, w2_ref, b2_ref, w3_ref, b3_ref, o_ref):
    """One batch tile of the 3-layer MLP, computed transposed.

    Layout: features live on sublanes, batch samples on lanes, so every layer
    is an MXU matmul (weight in its native PyTorch (out, in) layout on the
    left) and the input/output tiles are lane-dense.  Elementwise math (bias
    add, ReLU) stays in f32; operands are cast to bf16 right before each dot.
    """
    x_t = x_ref[...].astype(jnp.bfloat16)                        # (4, bb)

    # fc1 + relu   (H, 4) @ (4, bb) -> (H, bb)   (MXU, f32 accumulate)
    h1 = jnp.dot(w1_ref[...], x_t,
                 preferred_element_type=jnp.float32) + b1_ref[...]
    h1 = jnp.maximum(h1, 0.0)

    # fc2 + relu   (256, H) @ (H, bb) -> (256, bb)
    h2 = jnp.dot(w2_ref[...], h1.astype(jnp.bfloat16),
                 preferred_element_type=jnp.float32) + b2_ref[...]
    h2 = jnp.maximum(h2, 0.0)

    # fc3          (4, 256) @ (256, bb) -> (4, bb)
    out = jnp.dot(w3_ref[...], h2.astype(jnp.bfloat16),
                  preferred_element_type=jnp.float32) + b3_ref[...]
    o_ref[...] = out.astype(o_ref.dtype)


def prepare_params(params):
    """One-time weight prep: bf16 MXU operands, f32 column-vector biases.

    PyTorch nn.Linear weights are (out, in), which is exactly the left-operand
    layout the transposed kernel wants -> no transposes / padding needed.
    """
    return {
        "w1": params["fc1_w"].astype(jnp.bfloat16),               # (H, 4)
        "b1": params["fc1_b"].astype(jnp.float32).reshape(-1, 1),  # (H, 1)
        "w2": params["fc2_w"].astype(jnp.bfloat16),               # (256, H)
        "b2": params["fc2_b"].astype(jnp.float32).reshape(-1, 1),  # (256, 1)
        "w3": params["fc3_w"].astype(jnp.bfloat16),               # (4, 256)
        "b3": params["fc3_b"].astype(jnp.float32).reshape(-1, 1),  # (4, 1)
    }


@functools.partial(jax.jit, static_argnames=("block_b",))
def midi_model_forward(x, prepped, *, block_b=4096):
    """x: (B, 4) float32.  prepped: output of prepare_params()."""
    B = x.shape[0]
    H = prepped["w1"].shape[0]

    # Batch tiling along the lane axis: tiles are multiples of 128 lanes.
    bb = min(_round_up(block_b, 128), _round_up(B, 128))
    # Prefer >= 2 grid steps so the "parallel" axis can shard across the two
    # TensorCores on v7x once the batch is big enough to matter.
    if B > 128 and _round_up(B, bb) // bb < 2:
        bb = max(128, _round_up(-(-B // 2), 128))
    B_pad = _round_up(B, bb)
    grid = (B_pad // bb,)

    # Lane-dense transposed input slab (4, B_pad); padded columns are zero.
    x_t = jnp.transpose(x).astype(jnp.float32)
    if B_pad != B:
        x_t = jnp.pad(x_t, ((0, 0), (0, B_pad - B)))

    flops = 2 * B_pad * (IN_FEATURES * H + H * MID_FEATURES
                         + MID_FEATURES * OUT_FEATURES)
    bytes_accessed = (
        x_t.size * 4 + OUT_FEATURES * B_pad * 4
        + prepped["w1"].size * 2 + prepped["b1"].size * 4
        + prepped["w2"].size * 2 + prepped["b2"].size * 4
        + prepped["w3"].size * 2 + prepped["b3"].size * 4)

    # VMEM-resident weights/biases via constant index_maps.
    resident = lambda a: pl.BlockSpec(a.shape, lambda i: (0,) * a.ndim)

    out_t = pl.pallas_call(
        _mlp_kernel,
        out_shape=jax.ShapeDtypeStruct((OUT_FEATURES, B_pad), jnp.float32),
        grid=grid,
        in_specs=[
            pl.BlockSpec((IN_FEATURES, bb), lambda i: (0, i)),   # x: streamed
            resident(prepped["w1"]), resident(prepped["b1"]),
            resident(prepped["w2"]), resident(prepped["b2"]),
            resident(prepped["w3"]), resident(prepped["b3"]),
        ],
        out_specs=pl.BlockSpec((OUT_FEATURES, bb), lambda i: (0, i)),
        compiler_params=pltpu.CompilerParams(
            dimension_semantics=("parallel",),
            vmem_limit_bytes=32 * 1024 * 1024),
        cost_estimate=pl.CostEstimate(
            flops=flops, transcendentals=0, bytes_accessed=bytes_accessed),
    )(x_t, prepped["w1"], prepped["b1"], prepped["w2"], prepped["b2"],
      prepped["w3"], prepped["b3"])

    # out_t is (4, B_pad): 16 useful bytes per sample, so this final
    # transpose + row-slice touches only the minimal data (no more full
    # (B_pad, 128) f32 re-read).
    return jnp.transpose(out_t[:, :B])


def init_params(key):
    """Deterministic synthetic init matching nn.Linear shapes (weight: (out, in))."""
    ks = jax.random.split(key, 6)

    def lin(kw, kb, fan_in, fan_out):
        bound = 1.0 / jnp.sqrt(fan_in)
        w = jax.random.uniform(kw, (fan_out, fan_in), jnp.float32, -bound, bound)
        b = jax.random.uniform(kb, (fan_out,), jnp.float32, -bound, bound)
        return w, b

    fc1_w, fc1_b = lin(ks[0], ks[1], IN_FEATURES, HIDDEN_SIZE)
    fc2_w, fc2_b = lin(ks[2], ks[3], HIDDEN_SIZE, MID_FEATURES)
    fc3_w, fc3_b = lin(ks[4], ks[5], MID_FEATURES, OUT_FEATURES)
    return {"fc1_w": fc1_w, "fc1_b": fc1_b,
            "fc2_w": fc2_w, "fc2_b": fc2_b,
            "fc3_w": fc3_w, "fc3_b": fc3_b}


def reference_forward(x, p):
    h1 = jnp.maximum(x @ p["fc1_w"].T + p["fc1_b"], 0.0)
    h2 = jnp.maximum(h1 @ p["fc2_w"].T + p["fc2_b"], 0.0)
    return h2 @ p["fc3_w"].T + p["fc3_b"]


if __name__ == "__main__":
    key = jax.random.PRNGKey(0)
    k_x, k_p = jax.random.split(key)
    params = init_params(k_p)
    prepped = prepare_params(params)   # one-time weight prep (hoisted)

    batch = 8
    x = jax.random.normal(k_x, (batch, IN_FEATURES), jnp.float32)

    out = jax.block_until_ready(midi_model_forward(x, prepped))
    ref = reference_forward(x, params)

    assert out.shape == (batch, OUT_FEATURES), out.shape
    # bf16 matmul operands (f32 accumulation) -> loosened tolerance vs f32 ref.
    assert jnp.allclose(out, ref, atol=5e-2, rtol=5e-2), "mismatch vs reference"

    print("KERNEL_OK")
</pallas_src>

<mosaic_0001>
module attributes {stable_mosaic.version = 11 : i64} {
  func.func @_mlp_kernel(%arg0: i32, %arg1: memref<4x128xf32, #tpu.memory_space<vmem>>, %arg2: memref<128x4xbf16, #tpu.memory_space<vmem>>, %arg3: memref<128x1xf32, #tpu.memory_space<vmem>>, %arg4: memref<256x128xbf16, #tpu.memory_space<vmem>>, %arg5: memref<256x1xf32, #tpu.memory_space<vmem>>, %arg6: memref<4x256xbf16, #tpu.memory_space<vmem>>, %arg7: memref<4x1xf32, #tpu.memory_space<vmem>>, %arg8: memref<4x128xf32, #tpu.memory_space<vmem>>) attributes {dimension_semantics = [#tpu.dimension_semantics<parallel>], iteration_bounds = array<i64: 1>, scalar_prefetch = 0 : i64, scratch_operands = 0 : i64, tpu.core_type = #tpu.core_type<tc>, window_params = [{transform_indices = @transform_0, window_bounds = array<i64: 4, 128>}, {pipeline_mode = #tpu.pipeline_mode<synchronous>, transform_indices = @transform_1, window_bounds = array<i64: 128, 4>}, {pipeline_mode = #tpu.pipeline_mode<synchronous>, transform_indices = @transform_2, window_bounds = array<i64: 128, 1>}, {pipeline_mode = #tpu.pipeline_mode<synchronous>, transform_indices = @transform_3, window_bounds = array<i64: 256, 128>}, {pipeline_mode = #tpu.pipeline_mode<synchronous>, transform_indices = @transform_4, window_bounds = array<i64: 256, 1>}, {pipeline_mode = #tpu.pipeline_mode<synchronous>, transform_indices = @transform_5, window_bounds = array<i64: 4, 256>}, {pipeline_mode = #tpu.pipeline_mode<synchronous>, transform_indices = @transform_6, window_bounds = array<i64: 4, 1>}, {transform_indices = @transform_7, window_bounds = array<i64: 4, 128>}]} {
    %c0 = arith.constant 0 : index
    %c0_0 = arith.constant 0 : index
    %0 = vector.load %arg1[%c0, %c0_0] : memref<4x128xf32, #tpu.memory_space<vmem>>, vector<4x128xf32>
    %1 = arith.truncf %0 : vector<4x128xf32> to vector<4x128xbf16>
    %c0_1 = arith.constant 0 : index
    %c0_2 = arith.constant 0 : index
    %2 = vector.load %arg2[%c0_1, %c0_2] : memref<128x4xbf16, #tpu.memory_space<vmem>>, vector<128x4xbf16>
    %cst = arith.constant dense<0.000000e+00> : vector<128x128xf32>
    %3 = tpu.matmul %2, %1, %cst {dimension_numbers = #tpu.dot_dimension_numbers<[1], [0], [0], [1], [0, 0, 1, 1], [], []>} : vector<128x4xbf16>, vector<4x128xbf16>, vector<128x128xf32> -> vector<128x128xf32>
    %c0_3 = arith.constant 0 : index
    %c0_4 = arith.constant 0 : index
    %4 = vector.load %arg3[%c0_3, %c0_4] : memref<128x1xf32, #tpu.memory_space<vmem>>, vector<128x1xf32>
    %5 = vector.broadcast %4 : vector<128x1xf32> to vector<128x128xf32>
    %6 = arith.addf %3, %5 : vector<128x128xf32>
    %cst_5 = arith.constant 0.000000e+00 : f32
    %7 = vector.broadcast %cst_5 : f32 to vector<128x128xf32>
    %8 = arith.maximumf %6, %7 : vector<128x128xf32>
    %c0_6 = arith.constant 0 : index
    %c0_7 = arith.constant 0 : index
    %9 = vector.load %arg4[%c0_6, %c0_7] : memref<256x128xbf16, #tpu.memory_space<vmem>>, vector<256x128xbf16>
    %10 = arith.truncf %8 : vector<128x128xf32> to vector<128x128xbf16>
    %cst_8 = arith.constant dense<0.000000e+00> : vector<256x128xf32>
    %11 = tpu.matmul %9, %10, %cst_8 {dimension_numbers = #tpu.dot_dimension_numbers<[1], [0], [0], [1], [0, 0, 1, 1], [], []>} : vector<256x128xbf16>, vector<128x128xbf16>, vector<256x128xf32> -> vector<256x128xf32>
    %c0_9 = arith.constant 0 : index
    %c0_10 = arith.constant 0 : index
    %12 = vector.load %arg5[%c0_9, %c0_10] : memref<256x1xf32, #tpu.memory_space<vmem>>, vector<256x1xf32>
    %13 = vector.broadcast %12 : vector<256x1xf32> to vector<256x128xf32>
    %14 = arith.addf %11, %13 : vector<256x128xf32>
    %cst_11 = arith.constant 0.000000e+00 : f32
    %15 = vector.broadcast %cst_11 : f32 to vector<256x128xf32>
    %16 = arith.maximumf %14, %15 : vector<256x128xf32>
    %c0_12 = arith.constant 0 : index
    %c0_13 = arith.constant 0 : index
    %17 = vector.load %arg6[%c0_12, %c0_13] : memref<4x256xbf16, #tpu.memory_space<vmem>>, vector<4x256xbf16>
    %18 = arith.truncf %16 : vector<256x128xf32> to vector<256x128xbf16>
    %cst_14 = arith.constant dense<0.000000e+00> : vector<4x128xf32>
    %19 = tpu.matmul %17, %18, %cst_14 {dimension_numbers = #tpu.dot_dimension_numbers<[1], [0], [0], [1], [0, 0, 1, 1], [], []>} : vector<4x256xbf16>, vector<256x128xbf16>, vector<4x128xf32> -> vector<4x128xf32>
    %c0_15 = arith.constant 0 : index
    %c0_16 = arith.constant 0 : index
    %20 = vector.load %arg7[%c0_15, %c0_16] : memref<4x1xf32, #tpu.memory_space<vmem>>, vector<4x1xf32>
    %21 = vector.broadcast %20 : vector<4x1xf32> to vector<4x128xf32>
    %22 = arith.addf %19, %21 : vector<4x128xf32>
    %c0_17 = arith.constant 0 : index
    %c0_18 = arith.constant 0 : index
    %23 = vector.load %arg8[%c0_17, %c0_18] : memref<4x128xf32, #tpu.memory_space<vmem>>, vector<4x128xf32>
    tpu.vector_store %arg8[%c0_17, %c0_18], %22 {strides = array<i32>} : memref<4x128xf32, #tpu.memory_space<vmem>>, vector<4x128xf32>,
    return
  }
  func.func @transform_0(%arg0: i32) -> (i32, i32) {
    %c0_i32 = arith.constant 0 : i32
    %c0_i32_0 = arith.constant 0 : i32
    return %c0_i32, %arg0 : i32, i32
  }
  func.func @transform_1(%arg0: i32) -> (i32, i32) {
    %c0_i32 = arith.constant 0 : i32
    %c0_i32_0 = arith.constant 0 : i32
    %c0_i32_1 = arith.constant 0 : i32
    return %c0_i32, %c0_i32_0 : i32, i32
  }
  func.func @transform_2(%arg0: i32) -> (i32, i32) {
    %c0_i32 = arith.constant 0 : i32
    %c0_i32_0 = arith.constant 0 : i32
    %c0_i32_1 = arith.constant 0 : i32
    return %c0_i32, %c0_i32_0 : i32, i32
  }
  func.func @transform_3(%arg0: i32) -> (i32, i32) {
    %c0_i32 = arith.constant 0 : i32
    %c0_i32_0 = arith.constant 0 : i32
    %c0_i32_1 = arith.constant 0 : i32
    return %c0_i32, %c0_i32_0 : i32, i32
  }
  func.func @transform_4(%arg0: i32) -> (i32, i32) {
    %c0_i32 = arith.constant 0 : i32
    %c0_i32_0 = arith.constant 0 : i32
    %c0_i32_1 = arith.constant 0 : i32
    return %c0_i32, %c0_i32_0 : i32, i32
  }
  func.func @transform_5(%arg0: i32) -> (i32, i32) {
    %c0_i32 = arith.constant 0 : i32
    %c0_i32_0 = arith.constant 0 : i32
    %c0_i32_1 = arith.constant 0 : i32
    return %c0_i32, %c0_i32_0 : i32, i32
  }
  func.func @transform_6(%arg0: i32) -> (i32, i32) {
    %c0_i32 = arith.constant 0 : i32
    %c0_i32_0 = arith.constant 0 : i32
    %c0_i32_1 = arith.constant 0 : i32
    return %c0_i32, %c0_i32_0 : i32, i32
  }
  func.func @transform_7(%arg0: i32) -> (i32, i32) {
    %c0_i32 = arith.constant 0 : i32
    %c0_i32_0 = arith.constant 0 : i32
    return %c0_i32, %arg0 : i32, i32
  }
}

</mosaic_0001>

<llo_original>
// kernel: midi_model_forward.1
$region0: #{midi_model_forward.1}
  #allocation0 [shape = 'u32[]', space=smem, size = 0x4, offset = 0x4, fixed_abs, tag = 'smem constant byte address 0x4 - core index']
  #allocation1 [shape = 'u32[144,128]{1,0:T(1,128)}', space=vmem, size = 0x12000, scoped, tag = 'internal scratch']
  %s0 = inlined_call_operand.vmem [shape: f32[4,128], index: 0, kind: input, shape index: {}]
  %s1 = inlined_call_operand.vmem [shape: bf16[128,4], index: 1, kind: input, shape index: {}]
  %s2 = inlined_call_operand.vmem [shape: f32[128,1], index: 2, kind: input, shape index: {}]
  %s3 = inlined_call_operand.vmem [shape: bf16[256,128], index: 3, kind: input, shape index: {}]
  %s4 = inlined_call_operand.vmem [shape: f32[256,1], index: 4, kind: input, shape index: {}]
  %s5 = inlined_call_operand.vmem [shape: bf16[4,256], index: 5, kind: input, shape index: {}]
  %s6 = inlined_call_operand.vmem [shape: f32[4,1], index: 6, kind: input, shape index: {}]
  %s7 = inlined_call_operand.vmem [shape: f32[4,128], index: 7, kind: output, shape index: {}]
  %s8 = sld [smem:[#allocation0]]
  $region38: #{midi_model_forward.1} parent=0
    _
  %s10 = ssub.s32 1, %s8
  %s11 = scalar_select 0, %s10, %s8
  // Predicated region
  $region2: #{midi_model_forward.1} parent=0 // pred_check
    _
  $region3: #{midi_model_forward.1} parent=0 // pred_check_branch
    %13 = sbr.rel (0) target = $region5
  $region4: #{midi_model_forward.1} parent=0 // pred_region
    _
  $region5: #{midi_model_forward.1} parent=0 // pred_fallthru
    _
  // Predicated region
  $region6: #{midi_model_forward.1} parent=0 // pred_check
    _
  $region7: #{midi_model_forward.1} parent=0 // pred_check_branch
    %15 = sbr.rel (0) target = $region9
  $region8: #{midi_model_forward.1} parent=0 // pred_region
    _
  $region9: #{midi_model_forward.1} parent=0 // pred_fallthru
    _
  // Predicated region
  $region10: #{midi_model_forward.1} parent=0 // pred_check
    _
  $region11: #{midi_model_forward.1} parent=0 // pred_check_branch
    %17 = sbr.rel (0) target = $region13
  $region12: #{midi_model_forward.1} parent=0 // pred_region
    _
  $region13: #{midi_model_forward.1} parent=0 // pred_fallthru
    _
  // Predicated region
  $region14: #{midi_model_forward.1} parent=0 // pred_check
    _
  $region15: #{midi_model_forward.1} parent=0 // pred_check_branch
    %19 = sbr.rel (0) target = $region17
  $region16: #{midi_model_forward.1} parent=0 // pred_region
    _
  $region17: #{midi_model_forward.1} parent=0 // pred_fallthru
    _
  // Predicated region
  $region18: #{midi_model_forward.1} parent=0 // pred_check
    _
  $region19: #{midi_model_forward.1} parent=0 // pred_check_branch
    %21 = sbr.rel (0) target = $region21
  $region20: #{midi_model_forward.1} parent=0 // pred_region
    _
  $region21: #{midi_model_forward.1} parent=0 // pred_fallthru
    _
  // Predicated region
  $region22: #{midi_model_forward.1} parent=0 // pred_check
    _
  $region23: #{midi_model_forward.1} parent=0 // pred_check_branch
    %23 = sbr.rel (0) target = $region25
  $region24: #{midi_model_forward.1} parent=0 // pred_region
    _
  $region25: #{midi_model_forward.1} parent=0 // pred_fallthru
    _
  // Predicated region
  $region26: #{midi_model_forward.1} parent=0 // pred_check
    _
  $region27: #{midi_model_forward.1} parent=0 // pred_check_branch
    %25 = sbr.rel (0) target = $region29
  $region28: #{midi_model_forward.1} parent=0 // pred_region
    _
  $region29: #{midi_model_forward.1} parent=0 // pred_fallthru
    _
  %v27 = vld [vmem:[%s0] sm:$0xf]
  %v28 = vpack.c.bf16 %v27, %v27
  %v29 = vld [vmem:[%s1] sm:$0xf]
  %v30 = vld [vmem:[%s1 + $0x4] sm:$0xf]
  %v31 = vld [vmem:[%s1 + $0x8] sm:$0xf]
  %v32 = vld [vmem:[%s1 + $0xc] sm:$0xf]
  %v33 = vld [vmem:[%s1 + $0x10] sm:$0xf]
  %v34 = vld [vmem:[%s1 + $0x14] sm:$0xf]
  %v35 = vld [vmem:[%s1 + $0x18] sm:$0xf]
  %v36 = vld [vmem:[%s1 + $0x1c] sm:$0xf]
  %v37 = vld [vmem:[%s1 + $0x20] sm:$0xf]
  %v38 = vld [vmem:[%s1 + $0x24] sm:$0xf]
  %v39 = vld [vmem:[%s1 + $0x28] sm:$0xf]
  %v40 = vld [vmem:[%s1 + $0x2c] sm:$0xf]
  %v41 = vld [vmem:[%s1 + $0x30] sm:$0xf]
  %v42 = vld [vmem:[%s1 + $0x34] sm:$0xf]
  %v43 = vld [vmem:[%s1 + $0x38] sm:$0xf]
  %v44 = vld [vmem:[%s1 + $0x3c] sm:$0xf]
  %v45 = vld [vmem:[%s2] sm:$0xff]
  %v46 = vld [vmem:[%s2 + $0x8] sm:$0xff]
  %v47 = vld [vmem:[%s2 + $0x10] sm:$0xff]
  %v48 = vld [vmem:[%s2 + $0x18] sm:$0xff]
  %v49 = vld [vmem:[%s2 + $0x20] sm:$0xff]
  %v50 = vld [vmem:[%s2 + $0x28] sm:$0xff]
  %v51 = vld [vmem:[%s2 + $0x30] sm:$0xff]
  %v52 = vld [vmem:[%s2 + $0x38] sm:$0xff]
  %v53 = vld [vmem:[%s2 + $0x40] sm:$0xff]
  %v54 = vld [vmem:[%s2 + $0x48] sm:$0xff]
  %v55 = vld [vmem:[%s2 + $0x50] sm:$0xff]
  %v56 = vld [vmem:[%s2 + $0x58] sm:$0xff]
  %v57 = vld [vmem:[%s2 + $0x60] sm:$0xff]
  %v58 = vld [vmem:[%s2 + $0x68] sm:$0xff]
  %v59 = vld [vmem:[%s2 + $0x70] sm:$0xff]
  %v60 = vld [vmem:[%s2 + $0x78] sm:$0xff]
  %62 = vset.pattern.permute.xlu0 0
  %63 = vperm.xlu0 %62, %v45
  %v64 = vpop.permute.xlu0 %63
  %67 = vset.pattern.permute.xlu0 0
  %68 = vperm.xlu0 %67, %v46
  %v69 = vpop.permute.xlu0 %68
  %72 = vset.pattern.permute.xlu0 0
  %73 = vperm.xlu0 %72, %v47
  %v74 = vpop.permute.xlu0 %73
  %77 = vset.pattern.permute.xlu0 0
  %78 = vperm.xlu0 %77, %v48
  %v79 = vpop.permute.xlu0 %78
  %82 = vset.pattern.permute.xlu0 0
  %83 = vperm.xlu0 %82, %v49
  %v84 = vpop.permute.xlu0 %83
  %87 = vset.pattern.permute.xlu0 0
  %88 = vperm.xlu0 %87, %v50
  %v89 = vpop.permute.xlu0 %88
  %92 = vset.pattern.permute.xlu0 0
  %93 = vperm.xlu0 %92, %v51
  %v94 = vpop.permute.xlu0 %93
  %97 = vset.pattern.permute.xlu0 0
  %98 = vperm.xlu0 %97, %v52
  %v99 = vpop.permute.xlu0 %98
  %102 = vset.pattern.permute.xlu0 0
  %103 = vperm.xlu0 %102, %v53
  %v104 = vpop.permute.xlu0 %103
  %107 = vset.pattern.permute.xlu0 0
  %108 = vperm.xlu0 %107, %v54
  %v109 = vpop.permute.xlu0 %108
  %112 = vset.pattern.permute.xlu0 0
  %113 = vperm.xlu0 %112, %v55
  %v114 = vpop.permute.xlu0 %113
  %117 = vset.pattern.permute.xlu0 0
  %118 = vperm.xlu0 %117, %v56
  %v119 = vpop.permute.xlu0 %118
  %122 = vset.pattern.permute.xlu0 0
  %123 = vperm.xlu0 %122, %v57
  %v124 = vpop.permute.xlu0 %123
  %127 = vset.pattern.permute.xlu0 0
  %128 = vperm.xlu0 %127, %v58
  %v129 = vpop.permute.xlu0 %128
  %132 = vset.pattern.permute.xlu0 0
  %133 = vperm.xlu0 %132, %v59
  %v134 = vpop.permute.xlu0 %133
  %137 = vset.pattern.permute.xlu0 0
  %138 = vperm.xlu0 %137, %v60
  %v139 = vpop.permute.xlu0 %138
  %v157 = vunpack.c.l.b16 %v29
  %v158 = vunpack.c.l.b16 %v30
  %v159 = vunpack.c.l.b16 %v31
  %v160 = vunpack.c.l.b16 %v32
  %v161 = vunpack.c.l.b16 %v33
  %v162 = vunpack.c.l.b16 %v34
  %v163 = vunpack.c.l.b16 %v35
  %v164 = vunpack.c.l.b16 %v36
  %v165 = vunpack.c.l.b16 %v37
  %v166 = vunpack.c.l.b16 %v38
  %v167 = vunpack.c.l.b16 %v39
  %v168 = vunpack.c.l.b16 %v40
  %v169 = vunpack.c.l.b16 %v41
  %v170 = vunpack.c.l.b16 %v42
  %v171 = vunpack.c.l.b16 %v43
  %v172 = vunpack.c.l.b16 %v44
  %v173 = vpack.c.b16 %v158, %v157
  %v174 = vpack.c.b16 %v160, %v159
  %v175 = vpack.c.b16 %v162, %v161
  %v176 = vpack.c.b16 %v164, %v163
  %v177 = vpack.c.b16 %v166, %v165
  %v178 = vpack.c.b16 %v168, %v167
  %v179 = vpack.c.b16 %v170, %v169
  %v180 = vpack.c.b16 %v172, %v171
  %vm181 = vcmask 31744
  %v183 = vsel %vm181, %v173, 0
  %v186 = vsel %vm181, %v174, 0
  %v189 = vsel %vm181, %v175, 0
  %v192 = vsel %vm181, %v176, 0
  %v195 = vsel %vm181, %v177, 0
  %v198 = vsel %vm181, %v178, 0
  %v201 = vsel %vm181, %v179, 0
  %v204 = vsel %vm181, %v180, 0
  %vm206 = vcmask 1041408
  %v208 = vsel %vm206, %v28, 0
  %210 = vmatprep.subr.bf16.mxu0 0
  %211 = vmatpush1.bf16.msra.mxu0 %v208
  %212 = vmatprep.subr.bf16.mxu0 0
  %213 = vmatpush1.bf16.msra.mxu0 0
  %214 = vmatprep.subr.bf16.mxu0 0
  %215 = vmatpush1.bf16.msra.mxu0 0
  %216 = vmatprep.subr.bf16.mxu0 0
  %217 = vmatpush1.bf16.msra.mxu0 0
  %218 = vmatprep.subr.bf16.mxu0 0
  %219 = vmatpush1.bf16.msra.mxu0 0
  %220 = vmatprep.subr.bf16.mxu0 0
  %221 = vmatpush1.bf16.msra.mxu0 0
  %222 = vmatprep.subr.bf16.mxu0 0
  %223 = vmatpush1.bf16.msra.mxu0 0
  %224 = vmatprep.subr.bf16.mxu0 0
  %225 = vmatpush1.bf16.msra.mxu0 0
  %226 = vmatprep.subr.bf16.mxu0 0
  %227 = vmatpush1.bf16.msra.mxu0 0
  %228 = vmatprep.subr.bf16.mxu0 0
  %229 = vmatpush1.bf16.msra.mxu0 0
  %230 = vmatprep.subr.bf16.mxu0 0
  %231 = vmatpush1.bf16.msra.mxu0 0
  %232 = vmatprep.subr.bf16.mxu0 0
  %233 = vmatpush1.bf16.msra.mxu0 0
  %234 = vmatprep.subr.bf16.mxu0 0
  %235 = vmatpush1.bf16.msra.mxu0 0
  %236 = vmatprep.subr.bf16.mxu0 0
  %237 = vmatpush1.bf16.msra.mxu0 0
  %238 = vmatprep.subr.bf16.mxu0 0
  %239 = vmatpush1.bf16.msra.mxu0 0
  %240 = vmatprep.subr.bf16.mxu0 0
  %241 = vmatpush1.bf16.msra.mxu0 0
  %242 = vmatprep.mubr.bf16.mxu0 0
  %243 = vmatmul.mubr.bf16.gmra.mrb[0].mxu0 %v183
  %v244 = vpop.f32.mrb[0].mxu0
  %v245 = vadd.f32 %v64, %v244
  %v246 = vpop.f32.mrb[0].mxu0
  %v247 = vpop.f32.mrb[0].mxu0
  %v248 = vadd.f32 %v69, %v247
  %v249 = vpop.f32.mrb[0].mxu0
  %250 = vmatprep.mubr.bf16.mxu0 0
  %251 = vmatmul.mubr.bf16.gmra.mrb[0].mxu0 %v186
  %v252 = vpop.f32.mrb[0].mxu0
  %v253 = vadd.f32 %v74, %v252
  %v254 = vpop.f32.mrb[0].mxu0
  %v255 = vpop.f32.mrb[0].mxu0
  %v256 = vadd.f32 %v79, %v255
  %v257 = vpop.f32.mrb[0].mxu0
  %258 = vmatprep.mubr.bf16.mxu0 0
  %259 = vmatmul.mubr.bf16.gmra.mrb[0].mxu0 %v189
  %v260 = vpop.f32.mrb[0].mxu0
  %v261 = vadd.f32 %v84, %v260
  %v262 = vpop.f32.mrb[0].mxu0
  %v263 = vpop.f32.mrb[0].mxu0
  %v264 = vadd.f32 %v89, %v263
  %v265 = vpop.f32.mrb[0].mxu0
  %266 = vmatprep.mubr.bf16.mxu0 0
  %267 = vmatmul.mubr.bf16.gmra.mrb[0].mxu0 %v192
  %v268 = vpop.f32.mrb[0].mxu0
  %v269 = vadd.f32 %v94, %v268
  %v270 = vpop.f32.mrb[0].mxu0
  %v271 = vpop.f32.mrb[0].mxu0
  %v272 = vadd.f32 %v99, %v271
  %v273 = vpop.f32.mrb[0].mxu0
  %274 = vmatprep.mubr.bf16.mxu0 0
  %275 = vmatmul.mubr.bf16.gmra.mrb[0].mxu0 %v195
  %v276 = vpop.f32.mrb[0].mxu0
  %v277 = vadd.f32 %v104, %v276
  %v278 = vpop.f32.mrb[0].mxu0
  %v279 = vpop.f32.mrb[0].mxu0
  %v280 = vadd.f32 %v109, %v279
  %v281 = vpop.f32.mrb[0].mxu0
  %282 = vmatprep.mubr.bf16.mxu0 0
  %283 = vmatmul.mubr.bf16.gmra.mrb[0].mxu0 %v198
  %v284 = vpop.f32.mrb[0].mxu0
  %v285 = vadd.f32 %v114, %v284
  %v286 = vpop.f32.mrb[0].mxu0
  %v287 = vpop.f32.mrb[0].mxu0
  %v288 = vadd.f32 %v119, %v287
  %v289 = vpop.f32.mrb[0].mxu0
  %290 = vmatprep.mubr.bf16.mxu0 0
  %291 = vmatmul.mubr.bf16.gmra.mrb[0].mxu0 %v201
  %v292 = vpop.f32.mrb[0].mxu0
  %v293 = vadd.f32 %v124, %v292
  %v294 = vpop.f32.mrb[0].mxu0
  %v295 = vpop.f32.mrb[0].mxu0
  %v296 = vadd.f32 %v129, %v295
  %v297 = vpop.f32.mrb[0].mxu0
  %298 = vmatprep.mubr.bf16.mxu0 0
  %299 = vmatmul.mubr.bf16.gmra.mrb[0].mxu0 %v204
  %v300 = vpop.f32.mrb[0].mxu0
  %v301 = vadd.f32 %v134, %v300
  %v302 = vpop.f32.mrb[0].mxu0
  %v303 = vpop.f32.mrb[0].mxu0
  %v304 = vadd.f32 %v139, %v303
  %v305 = vpop.f32.mrb[0].mxu0
  %306 = vdwg.mxu0
  %v307 = vmax.f32 %v245, 0.0
  %v308 = vmax.f32 %v248, 0.0
  %v309 = vmax.f32 %v253, 0.0
  %v310 = vmax.f32 %v256, 0.0
  %v311 = vmax.f32 %v261, 0.0
  %v312 = vmax.f32 %v264, 0.0
  %v313 = vmax.f32 %v269, 0.0
  %v314 = vmax.f32 %v272, 0.0
  %v315 = vmax.f32 %v277, 0.0
  %v316 = vmax.f32 %v280, 0.0
  %v317 = vmax.f32 %v285, 0.0
  %v318 = vmax.f32 %v288, 0.0
  %v319 = vmax.f32 %v293, 0.0
  %v320 = vmax.f32 %v296, 0.0
  %v321 = vmax.f32 %v301, 0.0
  %v322 = vmax.f32 %v304, 0.0
  %v323 = vld [vmem:[%s3] sm:$0xf]
  %v324 = vld [vmem:[%s3 + $0x4] sm:$0xf]
  %v325 = vld [vmem:[%s3 + $0x8] sm:$0xf]
  %v326 = vld [vmem:[%s3 + $0xc] sm:$0xf]
  %v327 = vld [vmem:[%s3 + $0x10] sm:$0xf]
  %v328 = vld [vmem:[%s3 + $0x14] sm:$0xf]
  %v329 = vld [vmem:[%s3 + $0x18] sm:$0xf]
  %v330 = vld [vmem:[%s3 + $0x1c] sm:$0xf]
  %v331 = vld [vmem:[%s3 + $0x20] sm:$0xf]
  %v332 = vld [vmem:[%s3 + $0x24] sm:$0xf]
  %v333 = vld [vmem:[%s3 + $0x28] sm:$0xf]
  %v334 = vld [vmem:[%s3 + $0x2c] sm:$0xf]
  %v335 = vld [vmem:[%s3 + $0x30] sm:$0xf]
  %v336 = vld [vmem:[%s3 + $0x34] sm:$0xf]
  %v337 = vld [vmem:[%s3 + $0x38] sm:$0xf]
  %v338 = vld [vmem:[%s3 + $0x3c] sm:$0xf]
  %v339 = vld [vmem:[%s3 + $0x40] sm:$0xf]
  %v340 = vld [vmem:[%s3 + $0x44] sm:$0xf]
  %v341 = vld [vmem:[%s3 + $0x48] sm:$0xf]
  %v342 = vld [vmem:[%s3 + $0x4c] sm:$0xf]
  %v343 = vld [vmem:[%s3 + $0x50] sm:$0xf]
  %v344 = vld [vmem:[%s3 + $0x54] sm:$0xf]
  %v345 = vld [vmem:[%s3 + $0x58] sm:$0xf]
  %v346 = vld [vmem:[%s3 + $0x5c] sm:$0xf]
  %v347 = vld [vmem:[%s3 + $0x60] sm:$0xf]
  %v348 = vld [vmem:[%s3 + $0x64] sm:$0xf]
  %v349 = vld [vmem:[%s3 + $0x68] sm:$0xf]
  %v350 = vld [vmem:[%s3 + $0x6c] sm:$0xf]
  %v351 = vld [vmem:[%s3 + $0x70] sm:$0xf]
  %v352 = vld [vmem:[%s3 + $0x74] sm:$0xf]
  %v353 = vld [vmem:[%s3 + $0x78] sm:$0xf]
  %v354 = vld [vmem:[%s3 + $0x7c] sm:$0xf]
  %v355 = vpack.c.bf16 %v308, %v307
  %v356 = vpack.c.bf16 %v310, %v309
  %v357 = vpack.c.bf16 %v312, %v311
  %v358 = vpack.c.bf16 %v314, %v313
  %v359 = vpack.c.bf16 %v316, %v315
  %v360 = vpack.c.bf16 %v318, %v317
  %v361 = vpack.c.bf16 %v320, %v319
  %v362 = vpack.c.bf16 %v322, %v321
  %v363 = vld [vmem:[%s4] sm:$0xff]
  %v364 = vld [vmem:[%s4 + $0x8] sm:$0xff]
  %v365 = vld [vmem:[%s4 + $0x10] sm:$0xff]
  %v366 = vld [vmem:[%s4 + $0x18] sm:$0xff]
  %v367 = vld [vmem:[%s4 + $0x20] sm:$0xff]
  %v368 = vld [vmem:[%s4 + $0x28] sm:$0xff]
  %v369 = vld [vmem:[%s4 + $0x30] sm:$0xff]
  %v370 = vld [vmem:[%s4 + $0x38] sm:$0xff]
  %v371 = vld [vmem:[%s4 + $0x40] sm:$0xff]
  %v372 = vld [vmem:[%s4 + $0x48] sm:$0xff]
  %v373 = vld [vmem:[%s4 + $0x50] sm:$0xff]
  %v374 = vld [vmem:[%s4 + $0x58] sm:$0xff]
  %v375 = vld [vmem:[%s4 + $0x60] sm:$0xff]
  %v376 = vld [vmem:[%s4 + $0x68] sm:$0xff]
  %v377 = vld [vmem:[%s4 + $0x70] sm:$0xff]
  %v378 = vld [vmem:[%s4 + $0x78] sm:$0xff]
  %v379 = vld [vmem:[%s4 + $0x80] sm:$0xff]
  %v380 = vld [vmem:[%s4 + $0x88] sm:$0xff]
  %v381 = vld [vmem:[%s4 + $0x90] sm:$0xff]
  %v382 = vld [vmem:[%s4 + $0x98] sm:$0xff]
  %v383 = vld [vmem:[%s4 + $0xa0] sm:$0xff]
  %v384 = vld [vmem:[%s4 + $0xa8] sm:$0xff]
  %v385 = vld [vmem:[%s4 + $0xb0] sm:$0xff]
  %v386 = vld [vmem:[%s4 + $0xb8] sm:$0xff]
  %v387 = vld [vmem:[%s4 + $0xc0] sm:$0xff]
  %v388 = vld [vmem:[%s4 + $0xc8] sm:$0xff]
  %v389 = vld [vmem:[%s4 + $0xd0] sm:$0xff]
  %v390 = vld [vmem:[%s4 + $0xd8] sm:$0xff]
  %v391 = vld [vmem:[%s4 + $0xe0] sm:$0xff]
  %v392 = vld [vmem:[%s4 + $0xe8] sm:$0xff]
  %v393 = vld [vmem:[%s4 + $0xf0] sm:$0xff]
  %v394 = vld [vmem:[%s4 + $0xf8] sm:$0xff]
  %396 = vset.pattern.permute.xlu0 0
  %397 = vperm.xlu0 %396, %v363
  %v398 = vpop.permute.xlu0 %397
  %401 = vset.pattern.permute.xlu0 0
  %402 = vperm.xlu0 %401, %v364
  %v403 = vpop.permute.xlu0 %402
  %406 = vset.pattern.permute.xlu0 0
  %407 = vperm.xlu0 %406, %v365
  %v408 = vpop.permute.xlu0 %407
  %411 = vset.pattern.permute.xlu0 0
  %412 = vperm.xlu0 %411, %v366
  %v413 = vpop.permute.xlu0 %412
  %416 = vset.pattern.permute.xlu0 0
  %417 = vperm.xlu0 %416, %v367
  %v418 = vpop.permute.xlu0 %417
  %421 = vset.pattern.permute.xlu0 0
  %422 = vperm.xlu0 %421, %v368
  %v423 = vpop.permute.xlu0 %422
  %426 = vset.pattern.permute.xlu0 0
  %427 = vperm.xlu0 %426, %v369
  %v428 = vpop.permute.xlu0 %427
  %431 = vset.pattern.permute.xlu0 0
  %432 = vperm.xlu0 %431, %v370
  %v433 = vpop.permute.xlu0 %432
  %436 = vset.pattern.permute.xlu0 0
  %437 = vperm.xlu0 %436, %v371
  %v438 = vpop.permute.xlu0 %437
  %441 = vset.pattern.permute.xlu0 0
  %442 = vperm.xlu0 %441, %v372
  %v443 = vpop.permute.xlu0 %442
  %446 = vset.pattern.permute.xlu0 0
  %447 = vperm.xlu0 %446, %v373
  %v448 = vpop.permute.xlu0 %447
  %451 = vset.pattern.permute.xlu0 0
  %452 = vperm.xlu0 %451, %v374
  %v453 = vpop.permute.xlu0 %452
  %456 = vset.pattern.permute.xlu0 0
  %457 = vperm.xlu0 %456, %v375
  %v458 = vpop.permute.xlu0 %457
  %461 = vset.pattern.permute.xlu0 0
  %462 = vperm.xlu0 %461, %v376
  %v463 = vpop.permute.xlu0 %462
  %466 = vset.pattern.permute.xlu0 0
  %467 = vperm.xlu0 %466, %v377
  %v468 = vpop.permute.xlu0 %467
  %471 = vset.pattern.permute.xlu0 0
  %472 = vperm.xlu0 %471, %v378
  %v473 = vpop.permute.xlu0 %472
  %476 = vset.pattern.permute.xlu0 0
  %477 = vperm.xlu0 %476, %v379
  %v478 = vpop.permute.xlu0 %477
  %481 = vset.pattern.permute.xlu0 0
  %482 = vperm.xlu0 %481, %v380
  %v483 = vpop.permute.xlu0 %482
  %486 = vset.pattern.permute.xlu0 0
  %487 = vperm.xlu0 %486, %v381
  %v488 = vpop.permute.xlu0 %487
  %491 = vset.pattern.permute.xlu0 0
  %492 = vperm.xlu0 %491, %v382
  %v493 = vpop.permute.xlu0 %492
  %496 = vset.pattern.permute.xlu0 0
  %497 = vperm.xlu0 %496, %v383
  %v498 = vpop.permute.xlu0 %497
  %501 = vset.pattern.permute.xlu0 0
  %502 = vperm.xlu0 %501, %v384
  %v503 = vpop.permute.xlu0 %502
  %506 = vset.pattern.permute.xlu0 0
  %507 = vperm.xlu0 %506, %v385
  %v508 = vpop.permute.xlu0 %507
  %511 = vset.pattern.permute.xlu0 0
  %512 = vperm.xlu0 %511, %v386
  %v513 = vpop.permute.xlu0 %512
  %516 = vset.pattern.permute.xlu0 0
  %517 = vperm.xlu0 %516, %v387
  %v518 = vpop.permute.xlu0 %517
  %521 = vset.pattern.permute.xlu0 0
  %522 = vperm.xlu0 %521, %v388
  %v523 = vpop.permute.xlu0 %522
  %526 = vset.pattern.permute.xlu0 0
  %527 = vperm.xlu0 %526, %v389
  %v528 = vpop.permute.xlu0 %527
  %531 = vset.pattern.permute.xlu0 0
  %532 = vperm.xlu0 %531, %v390
  %v533 = vpop.permute.xlu0 %532
  %536 = vset.pattern.permute.xlu0 0
  %537 = vperm.xlu0 %536, %v391
  %v538 = vpop.permute.xlu0 %537
  %541 = vset.pattern.permute.xlu0 0
  %542 = vperm.xlu0 %541, %v392
  %v543 = vpop.permute.xlu0 %542
  %546 = vset.pattern.permute.xlu0 0
  %547 = vperm.xlu0 %546, %v393
  %v548 = vpop.permute.xlu0 %547
  %551 = vset.pattern.permute.xlu0 0
  %552 = vperm.xlu0 %551, %v394
  %v553 = vpop.permute.xlu0 %552
  %v587 = vunpack.c.l.b16 %v323
  %v588 = vunpack.c.l.b16 %v324
  %v589 = vunpack.c.l.b16 %v325
  %v590 = vunpack.c.l.b16 %v326
  %v591 = vunpack.c.l.b16 %v327
  %v592 = vunpack.c.l.b16 %v328
  %v593 = vunpack.c.l.b16 %v329
  %v594 = vunpack.c.l.b16 %v330
  %v595 = vunpack.c.l.b16 %v331
  %v596 = vunpack.c.l.b16 %v332
  %v597 = vunpack.c.l.b16 %v333
  %v598 = vunpack.c.l.b16 %v334
  %v599 = vunpack.c.l.b16 %v335
  %v600 = vunpack.c.l.b16 %v336
  %v601 = vunpack.c.l.b16 %v337
  %v602 = vunpack.c.l.b16 %v338
  %v603 = vunpack.c.l.b16 %v339
  %v604 = vunpack.c.l.b16 %v340
  %v605 = vunpack.c.l.b16 %v341
  %v606 = vunpack.c.l.b16 %v342
  %v607 = vunpack.c.l.b16 %v343
  %v608 = vunpack.c.l.b16 %v344
  %v609 = vunpack.c.l.b16 %v345
  %v610 = vunpack.c.l.b16 %v346
  %v611 = vunpack.c.l.b16 %v347
  %v612 = vunpack.c.l.b16 %v348
  %v613 = vunpack.c.l.b16 %v349
  %v614 = vunpack.c.l.b16 %v350
  %v615 = vunpack.c.l.b16 %v351
  %v616 = vunpack.c.l.b16 %v352
  %v617 = vunpack.c.l.b16 %v353
  %v618 = vunpack.c.l.b16 %v354
  %v619 = vpack.c.b16 %v588, %v587
  %v620 = vpack.c.b16 %v590, %v589
  %v621 = vpack.c.b16 %v592, %v591
  %v622 = vpack.c.b16 %v594, %v593
  %v623 = vpack.c.b16 %v596, %v595
  %v624 = vpack.c.b16 %v598, %v597
  %v625 = vpack.c.b16 %v600, %v599
  %v626 = vpack.c.b16 %v602, %v601
  %v627 = vpack.c.b16 %v604, %v603
  %v628 = vpack.c.b16 %v606, %v605
  %v629 = vpack.c.b16 %v608, %v607
  %v630 = vpack.c.b16 %v610, %v609
  %v631 = vpack.c.b16 %v612, %v611
  %v632 = vpack.c.b16 %v614, %v613
  %v633 = vpack.c.b16 %v616, %v615
  %v634 = vpack.c.b16 %v618, %v617
  %651 = vmatprep.subr.bf16.mxu0 0
  %652 = vmatpush1.bf16.msra.mxu0 %v355
  %653 = vmatprep.subr.bf16.mxu0 0
  %654 = vmatpush1.bf16.msra.mxu0 %v356
  %655 = vmatprep.subr.bf16.mxu0 0
  %656 = vmatpush1.bf16.msra.mxu0 %v357
  %657 = vmatprep.subr.bf16.mxu0 0
  %658 = vmatpush1.bf16.msra.mxu0 %v358
  %659 = vmatprep.subr.bf16.mxu0 0
  %660 = vmatpush1.bf16.msra.mxu0 %v359
  %661 = vmatprep.subr.bf16.mxu0 0
  %662 = vmatpush1.bf16.msra.mxu0 %v360
  %663 = vmatprep.subr.bf16.mxu0 0
  %664 = vmatpush1.bf16.msra.mxu0 %v361
  %665 = vmatprep.subr.bf16.mxu0 0
  %666 = vmatpush1.bf16.msra.mxu0 %v362
  %667 = vmatprep.subr.bf16.mxu0 0
  %668 = vmatpush1.bf16.msra.mxu0 0
  %669 = vmatprep.subr.bf16.mxu0 0
  %670 = vmatpush1.bf16.msra.mxu0 0
  %671 = vmatprep.subr.bf16.mxu0 0
  %672 = vmatpush1.bf16.msra.mxu0 0
  %673 = vmatprep.subr.bf16.mxu0 0
  %674 = vmatpush1.bf16.msra.mxu0 0
  %675 = vmatprep.subr.bf16.mxu0 0
  %676 = vmatpush1.bf16.msra.mxu0 0
  %677 = vmatprep.subr.bf16.mxu0 0
  %678 = vmatpush1.bf16.msra.mxu0 0
  %679 = vmatprep.subr.bf16.mxu0 0
  %680 = vmatpush1.bf16.msra.mxu0 0
  %681 = vmatprep.subr.bf16.mxu0 0
  %682 = vmatpush1.bf16.msra.mxu0 0
  %683 = vmatprep.mubr.bf16.mxu0 0
  %684 = vmatmul.mubr.bf16.gmra.mrb[0].mxu0 %v619
  %v685 = vpop.f32.mrb[0].mxu0
  %v686 = vadd.f32 %v398, %v685
  %v687 = vpop.f32.mrb[0].mxu0
  %v688 = vpop.f32.mrb[0].mxu0
  %v689 = vadd.f32 %v403, %v688
  %v690 = vpop.f32.mrb[0].mxu0
  %691 = vmatprep.mubr.bf16.mxu0 0
  %692 = vmatmul.mubr.bf16.gmra.mrb[0].mxu0 %v620
  %v693 = vpop.f32.mrb[0].mxu0
  %v694 = vadd.f32 %v408, %v693
  %v695 = vpop.f32.mrb[0].mxu0
  %v696 = vpop.f32.mrb[0].mxu0
  %v697 = vadd.f32 %v413, %v696
  %v698 = vpop.f32.mrb[0].mxu0
  %699 = vmatprep.mubr.bf16.mxu0 0
  %700 = vmatmul.mubr.bf16.gmra.mrb[0].mxu0 %v621
  %v701 = vpop.f32.mrb[0].mxu0
  %v702 = vadd.f32 %v418, %v701
  %v703 = vpop.f32.mrb[0].mxu0
  %v704 = vpop.f32.mrb[0].mxu0
  %v705 = vadd.f32 %v423, %v704
  %v706 = vpop.f32.mrb[0].mxu0
  %707 = vmatprep.mubr.bf16.mxu0 0
  %708 = vmatmul.mubr.bf16.gmra.mrb[0].mxu0 %v622
  %v709 = vpop.f32.mrb[0].mxu0
  %v710 = vadd.f32 %v428, %v709
  %v711 = vpop.f32.mrb[0].mxu0
  %v712 = vpop.f32.mrb[0].mxu0
  %v713 = vadd.f32 %v433, %v712
  %v714 = vpop.f32.mrb[0].mxu0
  %715 = vmatprep.mubr.bf16.mxu0 0
  %716 = vmatmul.mubr.bf16.gmra.mrb[0].mxu0 %v623
  %v717 = vpop.f32.mrb[0].mxu0
  %v718 = vadd.f32 %v438, %v717
  %v719 = vpop.f32.mrb[0].mxu0
  %v720 = vpop.f32.mrb[0].mxu0
  %v721 = vadd.f32 %v443, %v720
  %v722 = vpop.f32.mrb[0].mxu0
  %723 = vmatprep.mubr.bf16.mxu0 0
  %724 = vmatmul.mubr.bf16.gmra.mrb[0].mxu0 %v624
  %v725 = vpop.f32.mrb[0].mxu0
  %v726 = vadd.f32 %v448, %v725
  %v727 = vpop.f32.mrb[0].mxu0
  %v728 = vpop.f32.mrb[0].mxu0
  %v729 = vadd.f32 %v453, %v728
  %v730 = vpop.f32.mrb[0].mxu0
  %731 = vmatprep.mubr.bf16.mxu0 0
  %732 = vmatmul.mubr.bf16.gmra.mrb[0].mxu0 %v625
  %v733 = vpop.f32.mrb[0].mxu0
  %v734 = vadd.f32 %v458, %v733
  %v735 = vpop.f32.mrb[0].mxu0
  %v736 = vpop.f32.mrb[0].mxu0
  %v737 = vadd.f32 %v463, %v736
  %v738 = vpop.f32.mrb[0].mxu0
  %739 = vmatprep.mubr.bf16.mxu0 0
  %740 = vmatmul.mubr.bf16.gmra.mrb[0].mxu0 %v626
  %v741 = vpop.f32.mrb[0].mxu0
  %v742 = vadd.f32 %v468, %v741
  %v743 = vpop.f32.mrb[0].mxu0
  %v744 = vpop.f32.mrb[0].mxu0
  %v745 = vadd.f32 %v473, %v744
  %v746 = vpop.f32.mrb[0].mxu0
  %747 = vmatprep.mubr.bf16.mxu0 0
  %748 = vmatmul.mubr.bf16.gmra.mrb[0].mxu0 %v627
  %v749 = vpop.f32.mrb[0].mxu0
  %v750 = vadd.f32 %v478, %v749
  %v751 = vpop.f32.mrb[0].mxu0
  %v752 = vpop.f32.mrb[0].mxu0
  %v753 = vadd.f32 %v483, %v752
  %v754 = vpop.f32.mrb[0].mxu0
  %755 = vmatprep.mubr.bf16.mxu0 0
  %756 = vmatmul.mubr.bf16.gmra.mrb[0].mxu0 %v628
  %v757 = vpop.f32.mrb[0].mxu0
  %v758 = vadd.f32 %v488, %v757
  %v759 = vpop.f32.mrb[0].mxu0
  %v760 = vpop.f32.mrb[0].mxu0
  %v761 = vadd.f32 %v493, %v760
  %v762 = vpop.f32.mrb[0].mxu0
  %763 = vmatprep.mubr.bf16.mxu0 0
  %764 = vmatmul.mubr.bf16.gmra.mrb[0].mxu0 %v629
  %v765 = vpop.f32.mrb[0].mxu0
  %v766 = vadd.f32 %v498, %v765
  %v767 = vpop.f32.mrb[0].mxu0
  %v768 = vpop.f32.mrb[0].mxu0
  %v769 = vadd.f32 %v503, %v768
  %v770 = vpop.f32.mrb[0].mxu0
  %771 = vmatprep.mubr.bf16.mxu0 0
  %772 = vmatmul.mubr.bf16.gmra.mrb[0].mxu0 %v630
  %v773 = vpop.f32.mrb[0].mxu0
  %v774 = vadd.f32 %v508, %v773
  %v775 = vpop.f32.mrb[0].mxu0
  %v776 = vpop.f32.mrb[0].mxu0
  %v777 = vadd.f32 %v513, %v776
  %v778 = vpop.f32.mrb[0].mxu0
  %779 = vmatprep.mubr.bf16.mxu0 0
  %780 = vmatmul.mubr.bf16.gmra.mrb[0].mxu0 %v631
  %v781 = vpop.f32.mrb[0].mxu0
  %v782 = vadd.f32 %v518, %v781
  %v783 = vpop.f32.mrb[0].mxu0
  %v784 = vpop.f32.mrb[0].mxu0
  %v785 = vadd.f32 %v523, %v784
  %v786 = vpop.f32.mrb[0].mxu0
  %787 = vmatprep.mubr.bf16.mxu0 0
  %788 = vmatmul.mubr.bf16.gmra.mrb[0].mxu0 %v632
  %v789 = vpop.f32.mrb[0].mxu0
  %v790 = vadd.f32 %v528, %v789
  %v791 = vpop.f32.mrb[0].mxu0
  %v792 = vpop.f32.mrb[0].mxu0
  %v793 = vadd.f32 %v533, %v792
  %v794 = vpop.f32.mrb[0].mxu0
  %795 = vmatprep.mubr.bf16.mxu0 0
  %796 = vmatmul.mubr.bf16.gmra.mrb[0].mxu0 %v633
  %v797 = vpop.f32.mrb[0].mxu0
  %v798 = vadd.f32 %v538, %v797
  %v799 = vpop.f32.mrb[0].mxu0
  %v800 = vpop.f32.mrb[0].mxu0
  %v801 = vadd.f32 %v543, %v800
  %v802 = vpop.f32.mrb[0].mxu0
  %803 = vmatprep.mubr.bf16.mxu0 0
  %804 = vmatmul.mubr.bf16.gmra.mrb[0].mxu0 %v634
  %v805 = vpop.f32.mrb[0].mxu0
  %v806 = vadd.f32 %v548, %v805
  %v807 = vpop.f32.mrb[0].mxu0
  %v808 = vpop.f32.mrb[0].mxu0
  %v809 = vadd.f32 %v553, %v808
  %v810 = vpop.f32.mrb[0].mxu0
  %811 = vdwg.mxu0
  %v812 = vmax.f32 %v686, 0.0
  %v813 = vmax.f32 %v689, 0.0
  %v814 = vmax.f32 %v694, 0.0
  %v815 = vmax.f32 %v697, 0.0
  %v816 = vmax.f32 %v702, 0.0
  %v817 = vmax.f32 %v705, 0.0
  %v818 = vmax.f32 %v710, 0.0
  %v819 = vmax.f32 %v713, 0.0
  %v820 = vmax.f32 %v718, 0.0
  %v821 = vmax.f32 %v721, 0.0
  %v822 = vmax.f32 %v726, 0.0
  %v823 = vmax.f32 %v729, 0.0
  %v824 = vmax.f32 %v734, 0.0
  %v825 = vmax.f32 %v737, 0.0
  %v826 = vmax.f32 %v742, 0.0
  %v827 = vmax.f32 %v745, 0.0
  %v828 = vmax.f32 %v750, 0.0
  %v829 = vmax.f32 %v753, 0.0
  %v830 = vmax.f32 %v758, 0.0
  %v831 = vmax.f32 %v761, 0.0
  %v832 = vmax.f32 %v766, 0.0
  %v833 = vmax.f32 %v769, 0.0
  %v834 = vmax.f32 %v774, 0.0
  %v835 = vmax.f32 %v777, 0.0
  %v836 = vmax.f32 %v782, 0.0
  %v837 = vmax.f32 %v785, 0.0
  %v838 = vmax.f32 %v790, 0.0
  %v839 = vmax.f32 %v793, 0.0
  %v840 = vmax.f32 %v798, 0.0
  %v841 = vmax.f32 %v801, 0.0
  %v842 = vmax.f32 %v806, 0.0
  %v843 = vmax.f32 %v809, 0.0
  %v844 = vld [vmem:[%s5] sm:$0xf]
  %v845 = vpack.c.bf16 %v813, %v812
  %v846 = vpack.c.bf16 %v815, %v814
  %v847 = vpack.c.bf16 %v817, %v816
  %v848 = vpack.c.bf16 %v819, %v818
  %v849 = vpack.c.bf16 %v821, %v820
  %v850 = vpack.c.bf16 %v823, %v822
  %v851 = vpack.c.bf16 %v825, %v824
  %v852 = vpack.c.bf16 %v827, %v826
  %v853 = vpack.c.bf16 %v829, %v828
  %v854 = vpack.c.bf16 %v831, %v830
  %v855 = vpack.c.bf16 %v833, %v832
  %v856 = vpack.c.bf16 %v835, %v834
  %v857 = vpack.c.bf16 %v837, %v836
  %v858 = vpack.c.bf16 %v839, %v838
  %v859 = vpack.c.bf16 %v841, %v840
  %v860 = vpack.c.bf16 %v843, %v842
  %v861 = vld [vmem:[%s6] sm:$0xf]
  %863 = vset.pattern.permute.xlu0 0
  %864 = vperm.xlu0 %863, %v861
  %v865 = vpop.permute.xlu0 %864
  %v869 = vunpack.c.l.s4 1983009808
  %v870 = vunpack.c.0.s8 %v869
  %v871 = vlaneseq
  %v872 = vshrl.u32 %v871, 7
  %v873 = vsub.s32 %v870, %v872
  %v874 = vrot.slane %v844, %v873
  %v875 = vcombine.high %v874, %v874
  %878 = vmatprep.subr.bf16.mxu0 0
  %879 = vmatpush1.bf16.msra.mxu0 %v845
  %880 = vmatprep.subr.bf16.mxu0 0
  %881 = vmatpush1.bf16.msra.mxu0 %v846
  %882 = vmatprep.subr.bf16.mxu0 0
  %883 = vmatpush1.bf16.msra.mxu0 %v847
  %884 = vmatprep.subr.bf16.mxu0 0
  %885 = vmatpush1.bf16.msra.mxu0 %v848
  %886 = vmatprep.subr.bf16.mxu0 0
  %887 = vmatpush1.bf16.msra.mxu0 %v849
  %888 = vmatprep.subr.bf16.mxu0 0
  %889 = vmatpush1.bf16.msra.mxu0 %v850
  %890 = vmatprep.subr.bf16.mxu0 0
  %891 = vmatpush1.bf16.msra.mxu0 %v851
  %892 = vmatprep.subr.bf16.mxu0 0
  %893 = vmatpush1.bf16.msra.mxu0 %v852
  %894 = vmatprep.subr.bf16.mxu0 0
  %895 = vmatpush1.bf16.msra.mxu0 %v853
  %896 = vmatprep.subr.bf16.mxu0 0
  %897 = vmatpush1.bf16.msra.mxu0 %v854
  %898 = vmatprep.subr.bf16.mxu0 0
  %899 = vmatpush1.bf16.msra.mxu0 %v855
  %900 = vmatprep.subr.bf16.mxu0 0
  %901 = vmatpush1.bf16.msra.mxu0 %v856
  %902 = vmatprep.subr.bf16.mxu0 0
  %903 = vmatpush1.bf16.msra.mxu0 %v857
  %904 = vmatprep.subr.bf16.mxu0 0
  %905 = vmatpush1.bf16.msra.mxu0 %v858
  %906 = vmatprep.subr.bf16.mxu0 0
  %907 = vmatpush1.bf16.msra.mxu0 %v859
  %908 = vmatprep.subr.bf16.mxu0 0
  %909 = vmatpush1.bf16.msra.mxu0 %v860
  %910 = vmatprep.mubr.bf16.mxu0 %v875
  %911 = vmatmul.mubr.bf16.gmra.mrb[0].mxu0 %v874
  %v912 = vpop.f32.mrb[0].mxu0
  %v913 = vadd.f32 %v865, %v912
  %v914 = vpop.f32.mrb[0].mxu0
  %v915 = vpop.f32.mrb[0].mxu0
  %v916 = vpop.f32.mrb[0].mxu0
  %917 = vdwg.mxu0
  %918 = vst [vmem:[%s7] sm:$0xf] %v913
  // Predicated region
  $region30: #{midi_model_forward.1} parent=0 // pred_check
    _
  $region31: #{midi_model_forward.1} parent=0 // pred_check_branch
    %920 = sbr.rel (0) target = $region33
  $region32: #{midi_model_forward.1} parent=0 // pred_region
    _
  $region33: #{midi_model_forward.1} parent=0 // pred_fallthru
    _
  // Predicated region
  $region34: #{midi_model_forward.1} parent=0 // pred_check
    _
  $region35: #{midi_model_forward.1} parent=0 // pred_check_branch
    %922 = sbr.rel (0) target = $region37
  $region36: #{midi_model_forward.1} parent=0 // pred_region
    _
  $region37: #{midi_model_forward.1} parent=0 // pred_fallthru
    _

</llo_original>
